<compile_context>
chip_gen: v6e
topology: v6e:2x2x1
jax: 0.10.0
libtpu: 0.0.40
codegen_flags: <defaults>
</compile_context>

<pallas_src>
import jax
import jax.numpy as jnp
from jax.experimental import pallas as pl
from jax.experimental.pallas import tpu as pltpu


# ---------------------------------------------------------------------------
# Pallas kernels
# ---------------------------------------------------------------------------
def _mlp_l2norm_kernel(x_ref, w1_ref, b1_ref, w2_ref, b2_ref, o_ref):
    """o = l2norm(relu(x @ W1 + b1) @ W2 + b2); L2 norm over the last dim."""
    x = x_ref[...]                                                # (tm, Cin) f32
    h = jnp.dot(x, w1_ref[...], preferred_element_type=jnp.float32)
    h = jnp.maximum(h + b1_ref[...], 0.0)                         # Linear + ReLU
    y = jnp.dot(h, w2_ref[...], preferred_element_type=jnp.float32)
    y = y + b2_ref[...]                                           # Linear
    norm = jnp.sqrt(jnp.sum(y * y, axis=-1, keepdims=True))       # Normalize(2)
    o_ref[...] = y / (norm + 1e-7)


def _l2norm_kernel(x_ref, o_ref):
    """o = x / (||x||_2 + 1e-7), row-wise (use_mlp=False path)."""
    x = x_ref[...]
    norm = jnp.sqrt(jnp.sum(x * x, axis=-1, keepdims=True))
    o_ref[...] = x / (norm + 1e-7)


def _round_up(v, m):
    return ((v + m - 1) // m) * m


def _pick_tm(m, max_tm=512):
    """Row tile: multiple of 8, <= max_tm, and >= 2 grid steps when possible
    so both TensorCores get work on v7x (harmless on 1-TC v5e/v6e)."""
    tm = min(max_tm, _round_up(max(pl.cdiv(m, 2), 1), 8))
    return max(tm, 8)


def pallas_mlp_l2norm(x, w1, b1, w2, b2):
    """Fused Linear -> ReLU -> Linear -> L2-norm over rows: (M, Cin) -> (M, nc)."""
    M, Cin = x.shape
    nc = w1.shape[1]
    tm = _pick_tm(M)
    itemsize = 4
    cost = pl.CostEstimate(
        flops=2 * M * Cin * nc + 2 * M * nc * nc + 4 * M * nc,
        transcendentals=0,
        bytes_accessed=(M * Cin + Cin * nc + nc * nc + 2 * nc + M * nc) * itemsize,
    )
    return pl.pallas_call(
        _mlp_l2norm_kernel,
        out_shape=jax.ShapeDtypeStruct((M, nc), jnp.float32),
        grid=(pl.cdiv(M, tm),),
        in_specs=[
            pl.BlockSpec((tm, Cin), lambda i: (i, 0)),   # activations, tiled over M
            pl.BlockSpec((Cin, nc), lambda i: (0, 0)),   # W1, VMEM-resident
            pl.BlockSpec((1, nc), lambda i: (0, 0)),     # b1
            pl.BlockSpec((nc, nc), lambda i: (0, 0)),    # W2, VMEM-resident
            pl.BlockSpec((1, nc), lambda i: (0, 0)),     # b2
        ],
        out_specs=pl.BlockSpec((tm, nc), lambda i: (i, 0)),
        compiler_params=pltpu.CompilerParams(
            dimension_semantics=("parallel",)),
        cost_estimate=cost,
    )(x, w1, b1.reshape(1, nc), w2, b2.reshape(1, nc))


def pallas_l2norm(x):
    """Row-wise L2 normalization: (M, C) -> (M, C)."""
    M, C = x.shape
    tm = _pick_tm(M)
    return pl.pallas_call(
        _l2norm_kernel,
        out_shape=jax.ShapeDtypeStruct((M, C), jnp.float32),
        grid=(pl.cdiv(M, tm),),
        in_specs=[pl.BlockSpec((tm, C), lambda i: (i, 0))],
        out_specs=pl.BlockSpec((tm, C), lambda i: (i, 0)),
        compiler_params=pltpu.CompilerParams(
            dimension_semantics=("parallel",)),
    )(x)


# ---------------------------------------------------------------------------
# PatchSampleF parameters + forward
# ---------------------------------------------------------------------------
def create_mlp_params(key, feats, nc=256, init_gain=0.02):
    """PatchSampleF.create_mlp + init_weights('normal', 0.02):
    Linear weights ~ N(0, init_gain), biases = 0.  Stored as (in, out)."""
    params = []
    for feat in feats:
        input_nc = feat.shape[1]
        key, k1, k2 = jax.random.split(key, 3)
        params.append({
            "w1": jax.random.normal(k1, (input_nc, nc), jnp.float32) * init_gain,
            "b1": jnp.zeros((nc,), jnp.float32),
            "w2": jax.random.normal(k2, (nc, nc), jnp.float32) * init_gain,
            "b2": jnp.zeros((nc,), jnp.float32),
        })
    return params


def patch_sample_f_forward(feats, num_patches=64, patch_ids=None,
                           mlp_params=None, rng_key=None):
    """PatchSampleF.forward.  mlp_params=None  <=>  use_mlp=False."""
    if rng_key is None:
        rng_key = jax.random.PRNGKey(0)
    return_ids, return_feats = [], []
    for feat_id, feat in enumerate(feats):
        B, C, H, W = feat.shape
        feat_reshape = jnp.transpose(feat, (0, 2, 3, 1)).reshape(B, H * W, C)

        if num_patches > 0:
            if patch_ids is not None:
                patch_id = patch_ids[feat_id]
            else:
                # torch uses np.random.permutation; jax PRNG used for determinism
                rng_key, pkey = jax.random.split(rng_key)
                patch_id = jax.random.permutation(pkey, H * W)[
                    : int(min(num_patches, H * W))]
            patch_id = jnp.asarray(patch_id, jnp.int32)
            # gather SHRINKS the data (num_patches << H*W): cheap jnp.take;
            # everything downstream is a single fused Pallas kernel.
            x_sample = jnp.take(feat_reshape, patch_id, axis=1).reshape(-1, C)
            if mlp_params is not None:
                p = mlp_params[feat_id]
                x_sample = pallas_mlp_l2norm(
                    x_sample, p["w1"], p["b1"], p["w2"], p["b2"])
            else:
                x_sample = pallas_l2norm(x_sample)
            x_sample = x_sample.reshape(B, -1, x_sample.shape[-1])
        else:
            # TODO(synk): num_patches == 0 dense path (MLP over every pixel and
            # the original's L2-norm over the *spatial* dim) kept in plain JAX;
            # CUT/cryoGEM training always calls with num_patches > 0.
            patch_id = jnp.zeros((0,), jnp.int32)
            x_sample = feat_reshape                               # (B, H*W, C)
            if mlp_params is not None:
                p = mlp_params[feat_id]
                x_sample = jnp.maximum(x_sample @ p["w1"] + p["b1"], 0.0)
                x_sample = x_sample @ p["w2"] + p["b2"]
            norm = jnp.sqrt(jnp.sum(x_sample * x_sample, axis=1, keepdims=True))
            x_sample = x_sample / (norm + 1e-7)
            Cp = x_sample.shape[-1]
            x_sample = jnp.transpose(x_sample, (0, 2, 1)).reshape(B, Cp, H, W)
            x_sample = x_sample.reshape(B, -1, x_sample.shape[-1])

        return_ids.append(patch_id)
        return_feats.append(x_sample)
    return return_feats, return_ids


# ---------------------------------------------------------------------------
def _reference_forward(feats, patch_ids, mlp_params):
    """Pure-JAX reference for the num_patches > 0 path."""
    outs = []
    for feat_id, feat in enumerate(feats):
        B, C, H, W = feat.shape
        fr = jnp.transpose(feat, (0, 2, 3, 1)).reshape(B, H * W, C)
        xs = jnp.take(fr, patch_ids[feat_id], axis=1).reshape(-1, C)
        if mlp_params is not None:
            p = mlp_params[feat_id]
            xs = jnp.maximum(xs @ p["w1"] + p["b1"], 0.0) @ p["w2"] + p["b2"]
        norm = jnp.sqrt(jnp.sum(xs * xs, axis=-1, keepdims=True))
        xs = xs / (norm + 1e-7)
        outs.append(xs.reshape(B, -1, xs.shape[-1]))
    return outs


if __name__ == "__main__":
    key = jax.random.PRNGKey(0)
    kf0, kf1, kf2, kmlp, kid = jax.random.split(key, 5)

    # small multi-scale feature stack (as emitted by the cryoGEM encoder)
    B, num_patches, nc = 2, 64, 256
    feats = [
        jax.random.normal(kf0, (B, 4, 16, 16), jnp.float32),
        jax.random.normal(kf1, (B, 32, 8, 8), jnp.float32),
        jax.random.normal(kf2, (B, 128, 4, 4), jnp.float32),
    ]

    # deterministic patch ids, shared by the Pallas run and the reference
    patch_ids = []
    for feat in feats:
        HW = feat.shape[2] * feat.shape[3]
        kid, kp = jax.random.split(kid)
        patch_ids.append(
            jax.random.permutation(kp, HW)[: min(num_patches, HW)].astype(jnp.int32))

    mlp_params = create_mlp_params(kmlp, feats, nc=nc)

    # use_mlp=True path: gather -> fused Linear -> ReLU -> Linear -> L2norm
    feats_mlp, ids_mlp = patch_sample_f_forward(
        feats, num_patches=num_patches, patch_ids=patch_ids, mlp_params=mlp_params)
    # use_mlp=False path: L2norm kernel only
    feats_raw, ids_raw = patch_sample_f_forward(
        feats, num_patches=num_patches, patch_ids=patch_ids, mlp_params=None)
    jax.block_until_ready((feats_mlp, feats_raw))

    ref_mlp = _reference_forward(feats, patch_ids, mlp_params)
    ref_raw = _reference_forward(feats, patch_ids, None)

    for i, feat in enumerate(feats):
        HW = feat.shape[2] * feat.shape[3]
        P = min(num_patches, HW)
        assert feats_mlp[i].shape == (B, P, nc), feats_mlp[i].shape
        assert feats_raw[i].shape == (B, P, feat.shape[1]), feats_raw[i].shape
        assert ids_mlp[i].shape == (P,)
        assert bool(jnp.all(jnp.isfinite(feats_mlp[i])))
        # rows are unit-norm after Normalize(2)
        nrm = jnp.linalg.norm(feats_mlp[i], axis=-1)
        assert bool(jnp.allclose(nrm, 1.0, atol=1e-3)), float(jnp.max(jnp.abs(nrm - 1)))
        assert bool(jnp.allclose(feats_mlp[i], ref_mlp[i], atol=5e-3)), (
            float(jnp.max(jnp.abs(feats_mlp[i] - ref_mlp[i]))))
        assert bool(jnp.allclose(feats_raw[i], ref_raw[i], atol=1e-5)), (
            float(jnp.max(jnp.abs(feats_raw[i] - ref_raw[i]))))

    print("KERNEL_OK")
</pallas_src>

<mosaic_0001>
module attributes {stable_mosaic.version = 11 : i64} {
  func.func @_mlp_l2norm_kernel(%arg0: i32, %arg1: memref<64x4xf32, #tpu.memory_space<vmem>>, %arg2: memref<4x256xf32, #tpu.memory_space<vmem>>, %arg3: memref<1x256xf32, #tpu.memory_space<vmem>>, %arg4: memref<256x256xf32, #tpu.memory_space<vmem>>, %arg5: memref<1x256xf32, #tpu.memory_space<vmem>>, %arg6: memref<64x256xf32, #tpu.memory_space<vmem>>) attributes {dimension_semantics = [#tpu.dimension_semantics<parallel>], iteration_bounds = array<i64: 2>, scalar_prefetch = 0 : i64, scratch_operands = 0 : i64, tpu.core_type = #tpu.core_type<tc>, window_params = [{transform_indices = @transform_0, window_bounds = array<i64: 64, 4>}, {pipeline_mode = #tpu.pipeline_mode<synchronous>, transform_indices = @transform_1, window_bounds = array<i64: 4, 256>}, {pipeline_mode = #tpu.pipeline_mode<synchronous>, transform_indices = @transform_2, window_bounds = array<i64: 1, 256>}, {pipeline_mode = #tpu.pipeline_mode<synchronous>, transform_indices = @transform_3, window_bounds = array<i64: 256, 256>}, {pipeline_mode = #tpu.pipeline_mode<synchronous>, transform_indices = @transform_4, window_bounds = array<i64: 1, 256>}, {transform_indices = @transform_5, window_bounds = array<i64: 64, 256>}]} {
    %c0 = arith.constant 0 : index
    %c0_0 = arith.constant 0 : index
    %0 = vector.load %arg1[%c0, %c0_0] : memref<64x4xf32, #tpu.memory_space<vmem>>, vector<64x4xf32>
    %c0_1 = arith.constant 0 : index
    %c0_2 = arith.constant 0 : index
    %1 = vector.load %arg2[%c0_1, %c0_2] : memref<4x256xf32, #tpu.memory_space<vmem>>, vector<4x256xf32>
    %cst = arith.constant dense<0.000000e+00> : vector<64x256xf32>
    %2 = tpu.matmul %0, %1, %cst {dimension_numbers = #tpu.dot_dimension_numbers<[1], [0], [0], [1], [0, 0, 1, 1], [], []>} : vector<64x4xf32>, vector<4x256xf32>, vector<64x256xf32> -> vector<64x256xf32>
    %c0_3 = arith.constant 0 : index
    %c0_4 = arith.constant 0 : index
    %3 = vector.load %arg3[%c0_3, %c0_4] : memref<1x256xf32, #tpu.memory_space<vmem>>, vector<1x256xf32>
    %4 = vector.broadcast %3 : vector<1x256xf32> to vector<64x256xf32>
    %5 = arith.addf %2, %4 : vector<64x256xf32>
    %cst_5 = arith.constant 0.000000e+00 : f32
    %6 = vector.broadcast %cst_5 : f32 to vector<64x256xf32>
    %7 = arith.maximumf %5, %6 : vector<64x256xf32>
    %c0_6 = arith.constant 0 : index
    %c0_7 = arith.constant 0 : index
    %8 = vector.load %arg4[%c0_6, %c0_7] : memref<256x256xf32, #tpu.memory_space<vmem>>, vector<256x256xf32>
    %cst_8 = arith.constant dense<0.000000e+00> : vector<64x256xf32>
    %9 = tpu.matmul %7, %8, %cst_8 {dimension_numbers = #tpu.dot_dimension_numbers<[1], [0], [0], [1], [0, 0, 1, 1], [], []>} : vector<64x256xf32>, vector<256x256xf32>, vector<64x256xf32> -> vector<64x256xf32>
    %c0_9 = arith.constant 0 : index
    %c0_10 = arith.constant 0 : index
    %10 = vector.load %arg5[%c0_9, %c0_10] : memref<1x256xf32, #tpu.memory_space<vmem>>, vector<1x256xf32>
    %11 = vector.broadcast %10 : vector<1x256xf32> to vector<64x256xf32>
    %12 = arith.addf %9, %11 : vector<64x256xf32>
    %13 = arith.mulf %12, %12 : vector<64x256xf32>
    %cst_11 = arith.constant dense<0.000000e+00> : vector<64xf32>
    %14 = vector.multi_reduction <add>, %13, %cst_11 [1] : vector<64x256xf32> to vector<64xf32>
    %15 = vector.shape_cast %14 : vector<64xf32> to vector<64x1xf32>
    %16 = math.sqrt %15 : vector<64x1xf32>
    %cst_12 = arith.constant 1.000000e-07 : f32
    %17 = vector.broadcast %cst_12 : f32 to vector<64x1xf32>
    %18 = arith.addf %16, %17 : vector<64x1xf32>
    %19 = vector.broadcast %18 : vector<64x1xf32> to vector<64x256xf32>
    %20 = arith.divf %12, %19 : vector<64x256xf32>
    %c0_13 = arith.constant 0 : index
    %c0_14 = arith.constant 0 : index
    %21 = vector.load %arg6[%c0_13, %c0_14] : memref<64x256xf32, #tpu.memory_space<vmem>>, vector<64x256xf32>
    tpu.vector_store %arg6[%c0_13, %c0_14], %20 {strides = array<i32>} : memref<64x256xf32, #tpu.memory_space<vmem>>, vector<64x256xf32>,
    return
  }
  func.func @transform_0(%arg0: i32) -> (i32, i32) {
    %c0_i32 = arith.constant 0 : i32
    %c0_i32_0 = arith.constant 0 : i32
    return %arg0, %c0_i32 : i32, i32
  }
  func.func @transform_1(%arg0: i32) -> (i32, i32) {
    %c0_i32 = arith.constant 0 : i32
    %c0_i32_0 = arith.constant 0 : i32
    %c0_i32_1 = arith.constant 0 : i32
    return %c0_i32, %c0_i32_0 : i32, i32
  }
  func.func @transform_2(%arg0: i32) -> (i32, i32) {
    %c0_i32 = arith.constant 0 : i32
    %c0_i32_0 = arith.constant 0 : i32
    %c0_i32_1 = arith.constant 0 : i32
    return %c0_i32, %c0_i32_0 : i32, i32
  }
  func.func @transform_3(%arg0: i32) -> (i32, i32) {
    %c0_i32 = arith.constant 0 : i32
    %c0_i32_0 = arith.constant 0 : i32
    %c0_i32_1 = arith.constant 0 : i32
    return %c0_i32, %c0_i32_0 : i32, i32
  }
  func.func @transform_4(%arg0: i32) -> (i32, i32) {
    %c0_i32 = arith.constant 0 : i32
    %c0_i32_0 = arith.constant 0 : i32
    %c0_i32_1 = arith.constant 0 : i32
    return %c0_i32, %c0_i32_0 : i32, i32
  }
  func.func @transform_5(%arg0: i32) -> (i32, i32) {
    %c0_i32 = arith.constant 0 : i32
    %c0_i32_0 = arith.constant 0 : i32
    return %arg0, %c0_i32 : i32, i32
  }
}

</mosaic_0001>

<llo_original>
// kernel: tpu_custom_call.1
$region0: #{tpu_custom_call.1}
  #allocation0 [shape = 'u32[]', space=smem, size = 0x4, offset = 0x4, fixed_abs, tag = 'smem constant byte address 0x4 - core index']
  #allocation1 [shape = 'u32[144,128]{1,0:T(1,128)}', space=vmem, size = 0x12000, scoped, tag = 'internal scratch']
  %s0 = inlined_call_operand.vmem [shape: f32[128,4], index: 0, kind: input, shape index: {}]
  %s1 = inlined_call_operand.vmem [shape: f32[4,256], index: 1, kind: input, shape index: {}]
  %s2 = inlined_call_operand.vmem [shape: f32[1,256], index: 2, kind: input, shape index: {}]
  %s3 = inlined_call_operand.hbm [shape: f32[256,256], index: 3, kind: input, shape index: {}]
  %s4 = inlined_call_operand.vmem [shape: f32[1,256], index: 4, kind: input, shape index: {}]
  %s5 = inlined_call_operand.hbm [shape: f32[128,256], index: 5, kind: output, shape index: {}]
  %s6 = sld [smem:[#allocation0]]
  $region57: #{tpu_custom_call.1} parent=0
    _
  %s8 = ssub.s32 1, %s6
  %s9 = scalar_select 0, %s8, %s6
  $region1: #{tpu_custom_call.1} parent=0
    #allocation2 [shape = 'u8[262144]{0}', space=vmem, size = 0x40000, scoped, tag = 'input window, operand 3, single buffered']
    #allocation3 [shape = 's32[2]{0}', space=sflag, size = 0x8, scoped, tag = 'scoped memory for tpu_custom_call.1']
    #allocation4 [shape = 's32[2]{0}', space=sflag, size = 0x8, scoped, tag = 'scoped memory for tpu_custom_call.1']
    #allocation5 [shape = 'u8[131072]{0}', space=vmem, size = 0x20000, scoped, tag = 'output window, operand 0']
    %10 = vsyncpa [#allocation3], 0
    %11 = vsyncpa [#allocation4], 0
    %s12 = scalar_lea.sflag [#allocation4], 1
    %13 = vsyncpa %s12, 0
    loop: start=0, step=1, limit=4
    $region2: #{tpu_custom_call.1} parent=1 // loop_pre_header
      _
    $region3: #{tpu_custom_call.1} parent=1 // loop_header
      %s15 = sphi 0, %s19
      %p16 = scmp.ge.s32.totalorder %s15, 4
      %s25 = sphi 0, %s27
      %s28 = sphi 0, %s25
      %s29 = sphi 0, %s28
      %s45 = sphi 0, %s29
      %s49 = sphi 0, %s49
      %s51 = sphi 0, %s49
      %s52 = sphi 0, %s51
      %s66 = sphi 0, %s52
      %s70 = sphi 0, %s70
      %s72 = sphi 0, %s70
      %s73 = sphi 0, %s72
      %s87 = sphi 0, %s73
      %s91 = sphi 0, %s91
      %s93 = sphi 0, %s91
      %s94 = sphi 0, %s93
      %s108 = sphi 0, %s94
      %s112 = sphi 0, %s112
      %s114 = sphi 0, %s112
      %s115 = sphi 0, %s114
      %s129 = sphi 0, %s115
      %s135 = sphi 0, %s137
      %s138 = sphi 0, %s135
      %s139 = sphi 0, %s138
      %s155 = sphi 0, %s139
    $region4: #{tpu_custom_call.1} parent=1 // loop_header_branch
      %18 = sbr.rel (%p16) target = $region8
    $region5: #{tpu_custom_call.1} parent=1 // loop_body
      %s20 = ssub.s32 %s15, 1
      %s21 = ssub.s32 %s15, 2
      %s22 = sadd.s32 %s15, 1
      %s23 = ssub.s32 %s15, %s22
      %p24 = scmp.eq.s32.totalorder %s23, 0
      %s26 = sadd.s32 %s25, 1
      %s27 = scalar_select %p24, %s25, %s26
      %p30 = pneg %p24
      %p31 = scmp.eq.s32.totalorder %s15, 1
      %p32 = por %p30, %p31
      %p33 = scmp.ne.s32.totalorder %s25, %s28
      %p34 = scmp.eq.s32.totalorder %s15, 0
      %p35 = por %p33, %p34
      %p36 = scmp.ne.s32.totalorder %s25, %s28
      %p37 = scmp.eq.s32.totalorder %s20, 1
      %p38 = por %p36, %p37
      %p39 = scmp.ne.s32.totalorder %s28, %s29
      %p40 = scmp.eq.s32.totalorder %s20, 0
      %p41 = por %p39, %p40
      %p42 = scmp.ne.s32.totalorder %s28, %s29
      %p43 = scmp.eq.s32.totalorder %s21, 1
      %p44 = por %p42, %p43
      %p46 = scmp.ne.s32.totalorder %s29, %s45
      %p47 = scmp.eq.s32.totalorder %s21, 0
      %p48 = por %p46, %p47
      %s50 = sadd.s32 %s49, 1
      %p53 = scmp.eq.s32.totalorder %s15, 1
      %p54 = scmp.ne.s32.totalorder %s49, %s51
      %p55 = scmp.eq.s32.totalorder %s15, 0
      %p56 = por %p54, %p55
      %p57 = scmp.ne.s32.totalorder %s49, %s51
      %p58 = scmp.eq.s32.totalorder %s20, 1
      %p59 = por %p57, %p58
      %p60 = scmp.ne.s32.totalorder %s51, %s52
      %p61 = scmp.eq.s32.totalorder %s20, 0
      %p62 = por %p60, %p61
      %p63 = scmp.ne.s32.totalorder %s51, %s52
      %p64 = scmp.eq.s32.totalorder %s21, 1
      %p65 = por %p63, %p64
      %p67 = scmp.ne.s32.totalorder %s52, %s66
      %p68 = scmp.eq.s32.totalorder %s21, 0
      %p69 = por %p67, %p68
      %s71 = sadd.s32 %s70, 1
      %p74 = scmp.eq.s32.totalorder %s15, 1
      %p75 = scmp.ne.s32.totalorder %s70, %s72
      %p76 = scmp.eq.s32.totalorder %s15, 0
      %p77 = por %p75, %p76
      %p78 = scmp.ne.s32.totalorder %s70, %s72
      %p79 = scmp.eq.s32.totalorder %s20, 1
      %p80 = por %p78, %p79
      %p81 = scmp.ne.s32.totalorder %s72, %s73
      %p82 = scmp.eq.s32.totalorder %s20, 0
      %p83 = por %p81, %p82
      %p84 = scmp.ne.s32.totalorder %s72, %s73
      %p85 = scmp.eq.s32.totalorder %s21, 1
      %p86 = por %p84, %p85
      %p88 = scmp.ne.s32.totalorder %s73, %s87
      %p89 = scmp.eq.s32.totalorder %s21, 0
      %p90 = por %p88, %p89
      %s92 = sadd.s32 %s91, 1
      %p95 = scmp.eq.s32.totalorder %s15, 1
      %p96 = scmp.ne.s32.totalorder %s91, %s93
      %p97 = scmp.eq.s32.totalorder %s15, 0
      %p98 = por %p96, %p97
      %p99 = scmp.ne.s32.totalorder %s91, %s93
      %p100 = scmp.eq.s32.totalorder %s20, 1
      %p101 = por %p99, %p100
      %p102 = scmp.ne.s32.totalorder %s93, %s94
      %p103 = scmp.eq.s32.totalorder %s20, 0
      %p104 = por %p102, %p103
      %p105 = scmp.ne.s32.totalorder %s93, %s94
      %p106 = scmp.eq.s32.totalorder %s21, 1
      %p107 = por %p105, %p106
      %p109 = scmp.ne.s32.totalorder %s94, %s108
      %p110 = scmp.eq.s32.totalorder %s21, 0
      %p111 = por %p109, %p110
      %s113 = sadd.s32 %s112, 1
      %p116 = scmp.eq.s32.totalorder %s15, 1
      %p117 = scmp.ne.s32.totalorder %s112, %s114
      %p118 = scmp.eq.s32.totalorder %s15, 0
      %p119 = por %p117, %p118
      %p120 = scmp.ne.s32.totalorder %s112, %s114
      %p121 = scmp.eq.s32.totalorder %s20, 1
      %p122 = por %p120, %p121
      %p123 = scmp.ne.s32.totalorder %s114, %s115
      %p124 = scmp.eq.s32.totalorder %s20, 0
      %p125 = por %p123, %p124
      %p126 = scmp.ne.s32.totalorder %s114, %s115
      %p127 = scmp.eq.s32.totalorder %s21, 1
      %p128 = por %p126, %p127
      %p130 = scmp.ne.s32.totalorder %s115, %s129
      %p131 = scmp.eq.s32.totalorder %s21, 0
      %p132 = por %p130, %p131
      %s133 = ssub.s32 %s15, %s22
      %p134 = scmp.eq.s32.totalorder %s133, 0
      %s136 = sadd.s32 %s135, 1
      %s137 = scalar_select %p134, %s135, %s136
      %p140 = pneg %p134
      %p141 = scmp.eq.s32.totalorder %s15, 1
      %p142 = por %p140, %p141
      %p143 = scmp.ne.s32.totalorder %s135, %s138
      %p144 = scmp.eq.s32.totalorder %s15, 0
      %p145 = por %p143, %p144
      %p146 = scmp.ne.s32.totalorder %s135, %s138
      %p147 = scmp.eq.s32.totalorder %s20, 1
      %p148 = por %p146, %p147
      %p149 = scmp.ne.s32.totalorder %s138, %s139
      %p150 = scmp.eq.s32.totalorder %s20, 0
      %p151 = por %p149, %p150
      %p152 = scmp.ne.s32.totalorder %s138, %s139
      %p153 = scmp.eq.s32.totalorder %s21, 1
      %p154 = por %p152, %p153
      %p156 = scmp.ne.s32.totalorder %s139, %s155
      %p157 = scmp.eq.s32.totalorder %s21, 0
      %p158 = por %p156, %p157
      %p159 = scmp.le.s32.totalorder 1, %s15
      %p160 = scmp.lt.s32.totalorder %s15, 3
      %p161 = pnand %p159, %p160
      %p162 = pneg %p161
      // Predicated region
      $region9: #{tpu_custom_call.1} parent=5 // pred_check
        _
      $region10: #{tpu_custom_call.1} parent=5 // pred_check_branch
        %164 = sbr.rel (%p161) target = $region12
      $region11: #{tpu_custom_call.1} parent=5 // pred_region
        %s165 = ssub.s32 %s15, 1
        // Predicated region
        $region13: #{tpu_custom_call.1} parent=11 // pred_check
          %p166 = pneg %p62
        $region14: #{tpu_custom_call.1} parent=11 // pred_check_branch
          %168 = sbr.rel (%p166) target = $region16
        $region15: #{tpu_custom_call.1} parent=11 // pred_region
          _
        $region16: #{tpu_custom_call.1} parent=11 // pred_fallthru
          _
        // Predicated region
        $region17: #{tpu_custom_call.1} parent=11 // pred_check
          %p169 = pneg %p83
        $region18: #{tpu_custom_call.1} parent=11 // pred_check_branch
          %171 = sbr.rel (%p169) target = $region20
        $region19: #{tpu_custom_call.1} parent=11 // pred_region
          _
        $region20: #{tpu_custom_call.1} parent=11 // pred_fallthru
          _
        // Predicated region
        $region21: #{tpu_custom_call.1} parent=11 // pred_check
          %p172 = pneg %p104
        $region22: #{tpu_custom_call.1} parent=11 // pred_check_branch
          %174 = sbr.rel (%p172) target = $region24
        $region23: #{tpu_custom_call.1} parent=11 // pred_region
          %s176 = ssub.s32 8192, 8192
          %177 = vsyncadd [#allocation3], %s176
          %s178 = sshll.u32 [#allocation2], 4
          %s179 = int_to_ptr.vmem [resolvable:$true] %s178
          %184 = dma.hbm_to_vmem [thread:$0]  %s3, 8192, %s179, [#allocation3], 256, 256, 16
        $region24: #{tpu_custom_call.1} parent=11 // pred_fallthru
          _
        // Predicated region
        $region25: #{tpu_custom_call.1} parent=11 // pred_check
          %p185 = pneg %p125
        $region26: #{tpu_custom_call.1} parent=11 // pred_check_branch
          %187 = sbr.rel (%p185) target = $region28
        $region27: #{tpu_custom_call.1} parent=11 // pred_region
          _
        $region28: #{tpu_custom_call.1} parent=11 // pred_fallthru
          _
      $region12: #{tpu_custom_call.1} parent=5 // pred_fallthru
        _
      %p188 = scmp.lt.s32.totalorder %s15, 2
      // Predicated region
      $region29: #{tpu_custom_call.1} parent=5 // pred_check
        %p189 = pneg %p188
      $region30: #{tpu_custom_call.1} parent=5 // pred_check_branch
        %191 = sbr.rel (%p189) target = $region32
      $region31: #{tpu_custom_call.1} parent=5 // pred_region
        // Predicated region
        $region33: #{tpu_custom_call.1} parent=31 // pred_check
          %p192 = pneg %p35
        $region34: #{tpu_custom_call.1} parent=31 // pred_check_branch
          %194 = sbr.rel (%p192) target = $region36
        $region35: #{tpu_custom_call.1} parent=31 // pred_region
          %s195 = smul.u32 8, %s15
          %p196 = scmp.lt.s32.totalorder %s195, 15
          %s197 = scalar_select %p196, %s195, 15
          %s198 = smul.addr %s197, 8
          %s199 = scalar_lea.vmem %s0, %s198
          %s200 = smul.u32 8, %s15
        $region36: #{tpu_custom_call.1} parent=31 // pred_fallthru
          _
      $region32: #{tpu_custom_call.1} parent=5 // pred_fallthru
        _
      %p201 = scmp.le.s32.totalorder 1, %s15
      %p202 = scmp.lt.s32.totalorder %s15, 3
      %p203 = pnand %p201, %p202
      %p204 = pneg %p203
      // Predicated region
      $region37: #{tpu_custom_call.1} parent=5 // pred_check
        _
      $region38: #{tpu_custom_call.1} parent=5 // pred_check_branch
        %206 = sbr.rel (%p203) target = $region40
      $region39: #{tpu_custom_call.1} parent=5 // pred_region
        %s207 = ssub.s32 %s15, 1
        // Predicated region
        $region41: #{tpu_custom_call.1} parent=39 // pred_check
          %p208 = pneg %p104
        $region42: #{tpu_custom_call.1} parent=39 // pred_check_branch
          %210 = sbr.rel (%p208) target = $region44
        $region43: #{tpu_custom_call.1} parent=39 // pred_region
          %211 = dma.done [#allocation3], 8192
        $region44: #{tpu_custom_call.1} parent=39 // pred_fallthru
          _
        %s212 = smul.u32 8, %s20
        %p213 = scmp.lt.s32.totalorder %s212, 15
        %s214 = scalar_select %p213, %s212, 15
        %s215 = smul.addr %s214, 8
        %s216 = scalar_lea.vmem %s0, %s215
        %p217 = pneg %p41
        %p218 = pneg %p38
        %p219 = pneg %p62
        %p220 = pneg %p59
        %p221 = pneg %p83
        %p222 = pneg %p80
        %p223 = pneg %p104
        %p224 = pneg %p101
        %p225 = pneg %p125
        %p226 = pneg %p122
        %p227 = pneg %p151
        %p228 = pneg %p148
        %s229 = sand.u32 %s138, 1
        %s230 = scalar_lea.sflag [#allocation4], %s229
        %s231 = sand.u32 %s138, 1
        %s232 = smul.addr %s231, 128
        %s233 = scalar_lea.vmem [#allocation5], %s232
        %s234 = smul.u32 8, %s20
        %p235 = scmp.lt.s32.totalorder %s234, 15
        %s236 = scalar_select %p235, %s234, 15
        %s237 = smul.addr %s236, 8
        %s238 = scalar_lea.vmem %s0, %s237
        %s239 = smul.u32 8, %s20
        %s240 = smul.u32 8, %s20
        %v241 = vld [vmem:[%s238] sm:$0xff]
        %v242 = vld [vmem:[%s238 + $0x8] sm:$0xff]
        %v243 = vld [vmem:[%s238 + $0x10] sm:$0xff]
        %v244 = vld [vmem:[%s238 + $0x18] sm:$0xff]
        %v245 = vld [vmem:[%s238 + $0x20] sm:$0xff]
        %v246 = vld [vmem:[%s238 + $0x28] sm:$0xff]
        %v247 = vld [vmem:[%s238 + $0x30] sm:$0xff]
        %v248 = vld [vmem:[%s238 + $0x38] sm:$0xff]
        %v249 = vld [vmem:[%s1] sm:$0xff]
        %v250 = vld [vmem:[%s2] sm:$0x3]
        %v252 = vlaneseq
        %v253 = vshrl.u32 %v252, 7
        %v254 = vsub.s32 0, %v253
        %v255 = vrot.slane %v250, %v254
        %v256 = vlaneseq
        %v257 = vshrl.u32 %v256, 7
        %v258 = vsub.s32 1, %v257
        %v259 = vrot.slane %v250, %v258
        %v263 = vcombine.high %v249, %v249
        %vm264 = vcmask 31744
        %v266 = vsel %vm264, %v241, 0
        %v269 = vsel %vm264, %v242, 0
        %v272 = vsel %vm264, %v243, 0
        %v275 = vsel %vm264, %v244, 0
        %v278 = vsel %vm264, %v245, 0
        %v281 = vsel %vm264, %v246, 0
        %v284 = vsel %vm264, %v247, 0
        %v287 = vsel %vm264, %v248, 0
        %vm289 = vcmask 1043456
        %v290 = vsel %vm289, %v249, 0
        %v292 = vsel %vm289, %v263, 0
        %294 = vmatprep.subr.mxu0 0.0
        %295 = vmatpush1.msra.mxu0 0.0
        %296 = vmatprep.subr.mxu0 0.0
        %297 = vmatpush1.msra.mxu0 0.0
        %298 = vmatprep.subr.mxu0 0.0
        %299 = vmatpush1.msra.mxu0 0.0
        %300 = vmatprep.subr.mxu0 0.0
        %301 = vmatpush1.msra.mxu0 0.0
        %302 = vmatprep.subr.mxu0 0.0
        %303 = vmatpush1.msra.mxu0 0.0
        %304 = vmatprep.subr.mxu0 0.0
        %305 = vmatpush1.msra.mxu0 0.0
        %306 = vmatprep.subr.mxu0 0.0
        %307 = vmatpush1.msra.mxu0 0.0
        %308 = vmatprep.subr.mxu0 0.0
        %309 = vmatpush1.msra.mxu0 0.0
        %310 = vmatprep.subr.mxu0 0.0
        %311 = vmatpush1.msra.mxu0 0.0
        %312 = vmatprep.subr.mxu0 0.0
        %313 = vmatpush1.msra.mxu0 0.0
        %314 = vmatprep.subr.mxu0 0.0
        %315 = vmatpush1.msra.mxu0 0.0
        %316 = vmatprep.subr.mxu0 0.0
        %317 = vmatpush1.msra.mxu0 0.0
        %318 = vmatprep.subr.mxu0 0.0
        %319 = vmatpush1.msra.mxu0 0.0
        %320 = vmatprep.subr.mxu0 0.0
        %321 = vmatpush1.msra.mxu0 0.0
        %322 = vmatprep.subr.mxu0 0.0
        %323 = vmatpush1.msra.mxu0 0.0
        %324 = vmatprep.subr.mxu0 %v292
        %325 = vmatpush1.msra.mxu0 %v290
        %326 = vmatprep.subr.mxu0 0.0
        %327 = vmatpush2.msra.mxu0 0.0
        %328 = vmatprep.subr.mxu0 0.0
        %329 = vmatpush2.msra.mxu0 0.0
        %330 = vmatprep.subr.mxu0 0.0
        %331 = vmatpush2.msra.mxu0 0.0
        %332 = vmatprep.subr.mxu0 0.0
        %333 = vmatpush2.msra.mxu0 0.0
        %334 = vmatprep.subr.mxu0 0.0
        %335 = vmatpush2.msra.mxu0 0.0
        %336 = vmatprep.subr.mxu0 0.0
        %337 = vmatpush2.msra.mxu0 0.0
        %338 = vmatprep.subr.mxu0 0.0
        %339 = vmatpush2.msra.mxu0 0.0
        %340 = vmatprep.subr.mxu0 0.0
        %341 = vmatpush2.msra.mxu0 0.0
        %342 = vmatprep.subr.mxu0 0.0
        %343 = vmatpush2.msra.mxu0 0.0
        %344 = vmatprep.subr.mxu0 0.0
        %345 = vmatpush2.msra.mxu0 0.0
        %346 = vmatprep.subr.mxu0 0.0
        %347 = vmatpush2.msra.mxu0 0.0
        %348 = vmatprep.subr.mxu0 0.0
        %349 = vmatpush2.msra.mxu0 0.0
        %350 = vmatprep.subr.mxu0 0.0
        %351 = vmatpush2.msra.mxu0 0.0
        %352 = vmatprep.subr.mxu0 0.0
        %353 = vmatpush2.msra.mxu0 0.0
        %354 = vmatprep.subr.mxu0 0.0
        %355 = vmatpush2.msra.mxu0 0.0
        %356 = vmatprep.subr.mxu0 0.0
        %357 = vmatpush2.msra.mxu0 0.0
        %358 = vmatprep.mubr.f32.mxu0 0.0
        %359 = vmatmul.mubr.f32.gmra.mxu0 %v266
        %v360 = vpop.f32.mrf.mxu0
        %v361 = vadd.f32 %v255, %v360
        %v362 = vpop.f32.mrf.mxu0
        %v363 = vadd.f32 %v259, %v362
        %364 = vmatprep.mubr.f32.mxu0 0.0
        %365 = vmatmul.mubr.f32.gmra.mxu0 %v269
        %v366 = vpop.f32.mrf.mxu0
        %v367 = vadd.f32 %v255, %v366
        %v368 = vpop.f32.mrf.mxu0
        %v369 = vadd.f32 %v259, %v368
        %370 = vmatprep.mubr.f32.mxu0 0.0
        %371 = vmatmul.mubr.f32.gmra.mxu0 %v272
        %v372 = vpop.f32.mrf.mxu0
        %v373 = vadd.f32 %v255, %v372
        %v374 = vpop.f32.mrf.mxu0
        %v375 = vadd.f32 %v259, %v374
        %376 = vmatprep.mubr.f32.mxu0 0.0
        %377 = vmatmul.mubr.f32.gmra.mxu0 %v275
        %v378 = vpop.f32.mrf.mxu0
        %v379 = vadd.f32 %v255, %v378
        %v380 = vpop.f32.mrf.mxu0
        %v381 = vadd.f32 %v259, %v380
        %382 = vmatprep.mubr.f32.mxu0 0.0
        %383 = vmatmul.mubr.f32.gmra.mxu0 %v278
        %v384 = vpop.f32.mrf.mxu0
        %v385 = vadd.f32 %v255, %v384
        %v386 = vpop.f32.mrf.mxu0
        %v387 = vadd.f32 %v259, %v386
        %388 = vmatprep.mubr.f32.mxu0 0.0
        %389 = vmatmul.mubr.f32.gmra.mxu0 %v281
        %v390 = vpop.f32.mrf.mxu0
        %v391 = vadd.f32 %v255, %v390
        %v392 = vpop.f32.mrf.mxu0
        %v393 = vadd.f32 %v259, %v392
        %394 = vmatprep.mubr.f32.mxu0 0.0
        %395 = vmatmul.mubr.f32.gmra.mxu0 %v284
        %v396 = vpop.f32.mrf.mxu0
        %v397 = vadd.f32 %v255, %v396
        %v398 = vpop.f32.mrf.mxu0
        %v399 = vadd.f32 %v259, %v398
        %400 = vmatprep.mubr.f32.mxu0 0.0
        %401 = vmatmul.mubr.f32.gmra.mxu0 %v287
        %v402 = vpop.f32.mrf.mxu0
        %v403 = vadd.f32 %v255, %v402
        %v404 = vpop.f32.mrf.mxu0
        %v405 = vadd.f32 %v259, %v404
        %406 = vdwg.mxu0
        %v407 = vmax.f32 %v361, 0.0
        %v408 = vmax.f32 %v363, 0.0
        %v409 = vmax.f32 %v367, 0.0
        %v410 = vmax.f32 %v369, 0.0
        %v411 = vmax.f32 %v373, 0.0
        %v412 = vmax.f32 %v375, 0.0
        %v413 = vmax.f32 %v379, 0.0
        %v414 = vmax.f32 %v381, 0.0
        %v415 = vmax.f32 %v385, 0.0
        %v416 = vmax.f32 %v387, 0.0
        %v417 = vmax.f32 %v391, 0.0
        %v418 = vmax.f32 %v393, 0.0
        %v419 = vmax.f32 %v397, 0.0
        %v420 = vmax.f32 %v399, 0.0
        %v421 = vmax.f32 %v403, 0.0
        %v422 = vmax.f32 %v405, 0.0
        %v423 = vld [vmem:[#allocation2] sm:$0xff]
        %v424 = vld [vmem:[#allocation2 + $0x8] sm:$0xff]
        %v425 = vld [vmem:[#allocation2 + $0x10] sm:$0xff]
        %v426 = vld [vmem:[#allocation2 + $0x18] sm:$0xff]
        %v427 = vld [vmem:[#allocation2 + $0x20] sm:$0xff]
        %v428 = vld [vmem:[#allocation2 + $0x28] sm:$0xff]
        %v429 = vld [vmem:[#allocation2 + $0x30] sm:$0xff]
        %v430 = vld [vmem:[#allocation2 + $0x38] sm:$0xff]
        %v431 = vld [vmem:[#allocation2 + $0x40] sm:$0xff]
        %v432 = vld [vmem:[#allocation2 + $0x48] sm:$0xff]
        %v433 = vld [vmem:[#allocation2 + $0x50] sm:$0xff]
        %v434 = vld [vmem:[#allocation2 + $0x58] sm:$0xff]
        %v435 = vld [vmem:[#allocation2 + $0x60] sm:$0xff]
        %v436 = vld [vmem:[#allocation2 + $0x68] sm:$0xff]
        %v437 = vld [vmem:[#allocation2 + $0x70] sm:$0xff]
        %v438 = vld [vmem:[#allocation2 + $0x78] sm:$0xff]
        %v439 = vld [vmem:[#allocation2 + $0x80] sm:$0xff]
        %v440 = vld [vmem:[#allocation2 + $0x88] sm:$0xff]
        %v441 = vld [vmem:[#allocation2 + $0x90] sm:$0xff]
        %v442 = vld [vmem:[#allocation2 + $0x98] sm:$0xff]
        %v443 = vld [vmem:[#allocation2 + $0xa0] sm:$0xff]
        %v444 = vld [vmem:[#allocation2 + $0xa8] sm:$0xff]
        %v445 = vld [vmem:[#allocation2 + $0xb0] sm:$0xff]
        %v446 = vld [vmem:[#allocation2 + $0xb8] sm:$0xff]
        %v447 = vld [vmem:[#allocation2 + $0xc0] sm:$0xff]
        %v448 = vld [vmem:[#allocation2 + $0xc8] sm:$0xff]
        %v449 = vld [vmem:[#allocation2 + $0xd0] sm:$0xff]
        %v450 = vld [vmem:[#allocation2 + $0xd8] sm:$0xff]
        %v451 = vld [vmem:[#allocation2 + $0xe0] sm:$0xff]
        %v452 = vld [vmem:[#allocation2 + $0xe8] sm:$0xff]
        %v453 = vld [vmem:[#allocation2 + $0xf0] sm:$0xff]
        %v454 = vld [vmem:[#allocation2 + $0xf8] sm:$0xff]
        %v455 = vld [vmem:[#allocation2 + $0x100] sm:$0xff]
        %v456 = vld [vmem:[#allocation2 + $0x108] sm:$0xff]
        %v457 = vld [vmem:[#allocation2 + $0x110] sm:$0xff]
        %v458 = vld [vmem:[#allocation2 + $0x118] sm:$0xff]
        %v459 = vld [vmem:[#allocation2 + $0x120] sm:$0xff]
        %v460 = vld [vmem:[#allocation2 + $0x128] sm:$0xff]
        %v461 = vld [vmem:[#allocation2 + $0x130] sm:$0xff]
        %v462 = vld [vmem:[#allocation2 + $0x138] sm:$0xff]
        %v463 = vld [vmem:[#allocation2 + $0x140] sm:$0xff]
        %v464 = vld [vmem:[#allocation2 + $0x148] sm:$0xff]
        %v465 = vld [vmem:[#allocation2 + $0x150] sm:$0xff]
        %v466 = vld [vmem:[#allocation2 + $0x158] sm:$0xff]
        %v467 = vld [vmem:[#allocation2 + $0x160] sm:$0xff]
        %v468 = vld [vmem:[#allocation2 + $0x168] sm:$0xff]
        %v469 = vld [vmem:[#allocation2 + $0x170] sm:$0xff]
        %v470 = vld [vmem:[#allocation2 + $0x178] sm:$0xff]
        %v471 = vld [vmem:[#allocation2 + $0x180] sm:$0xff]
        %v472 = vld [vmem:[#allocation2 + $0x188] sm:$0xff]
        %v473 = vld [vmem:[#allocation2 + $0x190] sm:$0xff]
        %v474 = vld [vmem:[#allocation2 + $0x198] sm:$0xff]
        %v475 = vld [vmem:[#allocation2 + $0x1a0] sm:$0xff]
        %v476 = vld [vmem:[#allocation2 + $0x1a8] sm:$0xff]
        %v477 = vld [vmem:[#allocation2 + $0x1b0] sm:$0xff]
        %v478 = vld [vmem:[#allocation2 + $0x1b8] sm:$0xff]
        %v479 = vld [vmem:[#allocation2 + $0x1c0] sm:$0xff]
        %v480 = vld [vmem:[#allocation2 + $0x1c8] sm:$0xff]
        %v481 = vld [vmem:[#allocation2 + $0x1d0] sm:$0xff]
        %v482 = vld [vmem:[#allocation2 + $0x1d8] sm:$0xff]
        %v483 = vld [vmem:[#allocation2 + $0x1e0] sm:$0xff]
        %v484 = vld [vmem:[#allocation2 + $0x1e8] sm:$0xff]
        %v485 = vld [vmem:[#allocation2 + $0x1f0] sm:$0xff]
        %v486 = vld [vmem:[#allocation2 + $0x1f8] sm:$0xff]
        %v487 = vld [vmem:[%s4] sm:$0x3]
        %v489 = vlaneseq
        %v490 = vshrl.u32 %v489, 7
        %v491 = vsub.s32 0, %v490
        %v492 = vrot.slane %v487, %v491
        %v493 = vlaneseq
        %v494 = vshrl.u32 %v493, 7
        %v495 = vsub.s32 1, %v494
        %v496 = vrot.slane %v487, %v495
        %499 = vmatprep.subr.mxu0 %v454
        %500 = vmatpush1.msra.mxu0 %v453
        %501 = vmatprep.subr.mxu0 %v452
        %502 = vmatpush1.msra.mxu0 %v451
        %503 = vmatprep.subr.mxu0 %v450
        %504 = vmatpush1.msra.mxu0 %v449
        %505 = vmatprep.subr.mxu0 %v448
        %506 = vmatpush1.msra.mxu0 %v447
        %507 = vmatprep.subr.mxu0 %v446
        %508 = vmatpush1.msra.mxu0 %v445
        %509 = vmatprep.subr.mxu0 %v444
        %510 = vmatpush1.msra.mxu0 %v443
        %511 = vmatprep.subr.mxu0 %v442
        %512 = vmatpush1.msra.mxu0 %v441
        %513 = vmatprep.subr.mxu0 %v440
        %514 = vmatpush1.msra.mxu0 %v439
        %515 = vmatprep.subr.mxu0 %v438
        %516 = vmatpush1.msra.mxu0 %v437
        %517 = vmatprep.subr.mxu0 %v436
        %518 = vmatpush1.msra.mxu0 %v435
        %519 = vmatprep.subr.mxu0 %v434
        %520 = vmatpush1.msra.mxu0 %v433
        %521 = vmatprep.subr.mxu0 %v432
        %522 = vmatpush1.msra.mxu0 %v431
        %523 = vmatprep.subr.mxu0 %v430
        %524 = vmatpush1.msra.mxu0 %v429
        %525 = vmatprep.subr.mxu0 %v428
        %526 = vmatpush1.msra.mxu0 %v427
        %527 = vmatprep.subr.mxu0 %v426
        %528 = vmatpush1.msra.mxu0 %v425
        %529 = vmatprep.subr.mxu0 %v424
        %530 = vmatpush1.msra.mxu0 %v423
        %531 = vmatprep.subr.mxu0 %v486
        %532 = vmatpush2.msra.mxu0 %v485
        %533 = vmatprep.subr.mxu0 %v484
        %534 = vmatpush2.msra.mxu0 %v483
        %535 = vmatprep.subr.mxu0 %v482
        %536 = vmatpush2.msra.mxu0 %v481
        %537 = vmatprep.subr.mxu0 %v480
        %538 = vmatpush2.msra.mxu0 %v479
        %539 = vmatprep.subr.mxu0 %v478
        %540 = vmatpush2.msra.mxu0 %v477
        %541 = vmatprep.subr.mxu0 %v476
        %542 = vmatpush2.msra.mxu0 %v475
        %543 = vmatprep.subr.mxu0 %v474
        %544 = vmatpush2.msra.mxu0 %v473
        %545 = vmatprep.subr.mxu0 %v472
        %546 = vmatpush2.msra.mxu0 %v471
        %547 = vmatprep.subr.mxu0 %v470
        %548 = vmatpush2.msra.mxu0 %v469
        %549 = vmatprep.subr.mxu0 %v468
        %550 = vmatpush2.msra.mxu0 %v467
        %551 = vmatprep.subr.mxu0 %v466
        %552 = vmatpush2.msra.mxu0 %v465
        %553 = vmatprep.subr.mxu0 %v464
        %554 = vmatpush2.msra.mxu0 %v463
        %555 = vmatprep.subr.mxu0 %v462
        %556 = vmatpush2.msra.mxu0 %v461
        %557 = vmatprep.subr.mxu0 %v460
        %558 = vmatpush2.msra.mxu0 %v459
        %559 = vmatprep.subr.mxu0 %v458
        %560 = vmatpush2.msra.mxu0 %v457
        %561 = vmatprep.subr.mxu0 %v456
        %562 = vmatpush2.msra.mxu0 %v455
        %563 = vmatprep.mubr.f32.mxu0 %v408
        %564 = vmatmul.mubr.f32.gmra.mxu0 %v407
        %v565 = vpop.f32.mrf.mxu0
        %v566 = vadd.f32 %v492, %v565
        %v567 = vpop.f32.mrf.mxu0
        %v568 = vadd.f32 %v496, %v567
        %569 = vmatprep.mubr.f32.mxu0 %v410
        %570 = vmatmul.mubr.f32.gmra.mxu0 %v409
        %v571 = vpop.f32.mrf.mxu0
        %v572 = vadd.f32 %v492, %v571
        %v573 = vpop.f32.mrf.mxu0
        %v574 = vadd.f32 %v496, %v573
        %575 = vmatprep.mubr.f32.mxu0 %v412
        %576 = vmatmul.mubr.f32.gmra.mxu0 %v411
        %v577 = vpop.f32.mrf.mxu0
        %v578 = vadd.f32 %v492, %v577
        %v579 = vpop.f32.mrf.mxu0
        %v580 = vadd.f32 %v496, %v579
        %581 = vmatprep.mubr.f32.mxu0 %v414
        %582 = vmatmul.mubr.f32.gmra.mxu0 %v413
        %v583 = vpop.f32.mrf.mxu0
        %v584 = vadd.f32 %v492, %v583
        %v585 = vpop.f32.mrf.mxu0
        %v586 = vadd.f32 %v496, %v585
        %587 = vmatprep.mubr.f32.mxu0 %v416
        %588 = vmatmul.mubr.f32.gmra.mxu0 %v415
        %v589 = vpop.f32.mrf.mxu0
        %v590 = vadd.f32 %v492, %v589
        %v591 = vpop.f32.mrf.mxu0
        %v592 = vadd.f32 %v496, %v591
        %593 = vmatprep.mubr.f32.mxu0 %v418
        %594 = vmatmul.mubr.f32.gmra.mxu0 %v417
        %v595 = vpop.f32.mrf.mxu0
        %v596 = vadd.f32 %v492, %v595
        %v597 = vpop.f32.mrf.mxu0
        %v598 = vadd.f32 %v496, %v597
        %599 = vmatprep.mubr.f32.mxu0 %v420
        %600 = vmatmul.mubr.f32.gmra.mxu0 %v419
        %v601 = vpop.f32.mrf.mxu0
        %v602 = vadd.f32 %v492, %v601
        %v603 = vpop.f32.mrf.mxu0
        %v604 = vadd.f32 %v496, %v603
        %605 = vmatprep.mubr.f32.mxu0 %v422
        %606 = vmatmul.mubr.f32.gmra.mxu0 %v421
        %v607 = vpop.f32.mrf.mxu0
        %v608 = vadd.f32 %v492, %v607
        %v609 = vpop.f32.mrf.mxu0
        %v610 = vadd.f32 %v496, %v609
        %611 = vdwg.mxu0
        %v612 = vmul.f32 %v566, %v566
        %v613 = vmul.f32 %v568, %v568
        %v614 = vmul.f32 %v572, %v572
        %v615 = vmul.f32 %v574, %v574
        %v616 = vmul.f32 %v578, %v578
        %v617 = vmul.f32 %v580, %v580
        %v618 = vmul.f32 %v584, %v584
        %v619 = vmul.f32 %v586, %v586
        %v620 = vmul.f32 %v590, %v590
        %v621 = vmul.f32 %v592, %v592
        %v622 = vmul.f32 %v596, %v596
        %v623 = vmul.f32 %v598, %v598
        %v624 = vmul.f32 %v602, %v602
        %v625 = vmul.f32 %v604, %v604
        %v626 = vmul.f32 %v608, %v608
        %v627 = vmul.f32 %v610, %v610
        %v628 = vadd.f32 %v612, %v613
        %629 = vadd.xlane.f32.xlu0 %v628
        %v630 = vpop.xlane.xlu0 %629
        %v631 = vadd.f32 %v614, %v615
        %632 = vadd.xlane.f32.xlu0 %v631
        %v633 = vpop.xlane.xlu0 %632
        %v634 = vadd.f32 %v616, %v617
        %635 = vadd.xlane.f32.xlu0 %v634
        %v636 = vpop.xlane.xlu0 %635
        %v637 = vadd.f32 %v618, %v619
        %638 = vadd.xlane.f32.xlu0 %v637
        %v639 = vpop.xlane.xlu0 %638
        %v640 = vadd.f32 %v620, %v621
        %641 = vadd.xlane.f32.xlu0 %v640
        %v642 = vpop.xlane.xlu0 %641
        %v643 = vadd.f32 %v622, %v623
        %644 = vadd.xlane.f32.xlu0 %v643
        %v645 = vpop.xlane.xlu0 %644
        %v646 = vadd.f32 %v624, %v625
        %647 = vadd.xlane.f32.xlu0 %v646
        %v648 = vpop.xlane.xlu0 %647
        %v649 = vadd.f32 %v626, %v627
        %650 = vadd.xlane.f32.xlu0 %v649
        %v651 = vpop.xlane.xlu0 %650
        %v652 = vrsqrt.pop %v630
        %v653 = vmul.f32 %v630, %v652
        %vm654 = vcmp.eq.f32.partialorder %v630, inf
        %v655 = vsel %vm654, %v630, %v653
        %vm656 = vcmp.eq.f32.partialorder %v630, 0.0
        %v657 = vand.u32 %v630, 2147483648
        %v658 = vsel %vm656, %v657, %v655
        %v659 = vrsqrt.pop %v633
        %v660 = vmul.f32 %v633, %v659
        %vm661 = vcmp.eq.f32.partialorder %v633, inf
        %v662 = vsel %vm661, %v633, %v660
        %vm663 = vcmp.eq.f32.partialorder %v633, 0.0
        %v664 = vand.u32 %v633, 2147483648
        %v665 = vsel %vm663, %v664, %v662
        %v666 = vrsqrt.pop %v636
        %v667 = vmul.f32 %v636, %v666
        %vm668 = vcmp.eq.f32.partialorder %v636, inf
        %v669 = vsel %vm668, %v636, %v667
        %vm670 = vcmp.eq.f32.partialorder %v636, 0.0
        %v671 = vand.u32 %v636, 2147483648
        %v672 = vsel %vm670, %v671, %v669
        %v673 = vrsqrt.pop %v639
        %v674 = vmul.f32 %v639, %v673
        %vm675 = vcmp.eq.f32.partialorder %v639, inf
        %v676 = vsel %vm675, %v639, %v674
        %vm677 = vcmp.eq.f32.partialorder %v639, 0.0
        %v678 = vand.u32 %v639, 2147483648
        %v679 = vsel %vm677, %v678, %v676
        %v680 = vrsqrt.pop %v642
        %v681 = vmul.f32 %v642, %v680
        %vm682 = vcmp.eq.f32.partialorder %v642, inf
        %v683 = vsel %vm682, %v642, %v681
        %vm684 = vcmp.eq.f32.partialorder %v642, 0.0
        %v685 = vand.u32 %v642, 2147483648
        %v686 = vsel %vm684, %v685, %v683
        %v687 = vrsqrt.pop %v645
        %v688 = vmul.f32 %v645, %v687
        %vm689 = vcmp.eq.f32.partialorder %v645, inf
        %v690 = vsel %vm689, %v645, %v688
        %vm691 = vcmp.eq.f32.partialorder %v645, 0.0
        %v692 = vand.u32 %v645, 2147483648
        %v693 = vsel %vm691, %v692, %v690
        %v694 = vrsqrt.pop %v648
        %v695 = vmul.f32 %v648, %v694
        %vm696 = vcmp.eq.f32.partialorder %v648, inf
        %v697 = vsel %vm696, %v648, %v695
        %vm698 = vcmp.eq.f32.partialorder %v648, 0.0
        %v699 = vand.u32 %v648, 2147483648
        %v700 = vsel %vm698, %v699, %v697
        %v701 = vrsqrt.pop %v651
        %v702 = vmul.f32 %v651, %v701
        %vm703 = vcmp.eq.f32.partialorder %v651, inf
        %v704 = vsel %vm703, %v651, %v702
        %vm705 = vcmp.eq.f32.partialorder %v651, 0.0
        %v706 = vand.u32 %v651, 2147483648
        %v707 = vsel %vm705, %v706, %v704
        %v708 = vadd.f32 %v658, 1e-07
        %v709 = vadd.f32 %v665, 1e-07
        %v710 = vadd.f32 %v672, 1e-07
        %v711 = vadd.f32 %v679, 1e-07
        %v712 = vadd.f32 %v686, 1e-07
        %v713 = vadd.f32 %v693, 1e-07
        %v714 = vadd.f32 %v700, 1e-07
        %v715 = vadd.f32 %v707, 1e-07
        %v716 = vrcp.pop %v708
        %v717 = vmul.f32 %v566, %v716
        %v718 = vmul.f32 %v568, %v716
        %v719 = vrcp.pop %v709
        %v720 = vmul.f32 %v572, %v719
        %v721 = vmul.f32 %v574, %v719
        %v722 = vrcp.pop %v710
        %v723 = vmul.f32 %v578, %v722
        %v724 = vmul.f32 %v580, %v722
        %v725 = vrcp.pop %v711
        %v726 = vmul.f32 %v584, %v725
        %v727 = vmul.f32 %v586, %v725
        %v728 = vrcp.pop %v712
        %v729 = vmul.f32 %v590, %v728
        %v730 = vmul.f32 %v592, %v728
        %v731 = vrcp.pop %v713
        %v732 = vmul.f32 %v596, %v731
        %v733 = vmul.f32 %v598, %v731
        %v734 = vrcp.pop %v714
        %v735 = vmul.f32 %v602, %v734
        %v736 = vmul.f32 %v604, %v734
        %v737 = vrcp.pop %v715
        %v738 = vmul.f32 %v608, %v737
        %v739 = vmul.f32 %v610, %v737
        %740 = vst [vmem:[%s233] sm:$0xff] %v717
        %741 = vst [vmem:[%s233 + $0x8] sm:$0xff] %v718
        %742 = vst [vmem:[%s233 + $0x10] sm:$0xff] %v720
        %743 = vst [vmem:[%s233 + $0x18] sm:$0xff] %v721
        %744 = vst [vmem:[%s233 + $0x20] sm:$0xff] %v723
        %745 = vst [vmem:[%s233 + $0x28] sm:$0xff] %v724
        %746 = vst [vmem:[%s233 + $0x30] sm:$0xff] %v726
        %747 = vst [vmem:[%s233 + $0x38] sm:$0xff] %v727
        %748 = vst [vmem:[%s233 + $0x40] sm:$0xff] %v729
        %749 = vst [vmem:[%s233 + $0x48] sm:$0xff] %v730
        %750 = vst [vmem:[%s233 + $0x50] sm:$0xff] %v732
        %751 = vst [vmem:[%s233 + $0x58] sm:$0xff] %v733
        %752 = vst [vmem:[%s233 + $0x60] sm:$0xff] %v735
        %753 = vst [vmem:[%s233 + $0x68] sm:$0xff] %v736
        %754 = vst [vmem:[%s233 + $0x70] sm:$0xff] %v738
        %755 = vst [vmem:[%s233 + $0x78] sm:$0xff] %v739
        %s756 = sand.u32 %s138, 1
        %s757 = scalar_lea.sflag [#allocation4], %s756
        %s758 = sand.u32 %s138, 1
        %s759 = smul.addr %s758, 128
        %s760 = scalar_lea.vmem [#allocation5], %s759
        // Predicated region
        $region45: #{tpu_custom_call.1} parent=39 // pred_check
          %p761 = pneg %p148
        $region46: #{tpu_custom_call.1} parent=39 // pred_check_branch
          %763 = sbr.rel (%p761) target = $region48
        $region47: #{tpu_custom_call.1} parent=39 // pred_region
          %s764 = smul.u32 8, %s20
          %s766 = ssub.s32 2048, 2048
          %767 = vsyncadd %s757, %s766
          %s768 = smul.addr %s764, 2
          %s769 = smul.addr %s768, 128
          %s770 = scalar_lea.hbm %s5, %s769
          %s771 = sshll.u32 %s760, 4
          %s772 = int_to_ptr.vmem [resolvable:$true] %s771
          %777 = dma.vmem_to_hbm [thread:$0]  %s772, 2048, %s770, %s757, 256, 256, 16
        $region48: #{tpu_custom_call.1} parent=39 // pred_fallthru
          _
      $region40: #{tpu_custom_call.1} parent=5 // pred_fallthru
        _
      %p778 = scmp.le.s32.totalorder 2, %s15
      // Predicated region
      $region49: #{tpu_custom_call.1} parent=5 // pred_check
        %p779 = pneg %p778
      $region50: #{tpu_custom_call.1} parent=5 // pred_check_branch
        %781 = sbr.rel (%p779) target = $region52
      $region51: #{tpu_custom_call.1} parent=5 // pred_region
        %s782 = ssub.s32 %s15, 2
        // Predicated region
        $region53: #{tpu_custom_call.1} parent=51 // pred_check
          %p783 = pneg %p154
        $region54: #{tpu_custom_call.1} parent=51 // pred_check_branch
          %785 = sbr.rel (%p783) target = $region56
        $region55: #{tpu_custom_call.1} parent=51 // pred_region
          %s786 = sand.u32 %s139, 1
          %s787 = scalar_lea.sflag [#allocation4], %s786
          %s788 = sand.u32 %s139, 1
          %s789 = smul.addr %s788, 128
          %s790 = scalar_lea.vmem [#allocation5], %s789
          %791 = dma.done %s787, 2048
        $region56: #{tpu_custom_call.1} parent=51 // pred_fallthru
          _
      $region52: #{tpu_custom_call.1} parent=5 // pred_fallthru
        _
    $region6: #{tpu_custom_call.1} parent=1 // loop_footer
      %s19 = sadd.s32 1, %s15
    $region7: #{tpu_custom_call.1} parent=1 // loop_footer_branch
      %14 = sbr.rel target = $region3
    $region8: #{tpu_custom_call.1} parent=1 // loop_exit
      _
    %792 = vsyncpa [#allocation3], 1
    %s793 = scalar_lea.sflag [#allocation3], 1
    %794 = vsyncpa %s793, 1
    %795 = vsyncpa [#allocation4], 1
    %s796 = scalar_lea.sflag [#allocation4], 1
    %797 = vsyncpa %s796, 1

</llo_original>
